<compile_context>
chip_gen: v6e
topology: v6e:2x2x1
jax: 0.10.0
libtpu: 0.0.40
codegen_flags: <defaults>
</compile_context>

<pallas_src>
import functools

import jax
import jax.numpy as jnp
from jax import lax
from jax.experimental import pallas as pl
from jax.experimental.pallas import tpu as pltpu

# Finite fill that sinks to the bottom of a descending sort. Finite (not -inf)
# so padded rows give (fill - fill) == 0 in the final squared difference.
# Correctness assumes no real projected value ever reaches float32 min (true
# for any sane input scale).
_NEG_FILL = float(jnp.finfo(jnp.float32).min)


def _vmem_limit_bytes():
    """Generation-aware VMEM limit: ~13/16 of physical (v6e ~104MiB, v7x ~52MiB)."""
    try:
        cap = int(pltpu.get_tpu_info().vmem_capacity_bytes)
    except Exception:
        return 64 * 1024 * 1024
    return max(1, (cap * 13) // 16)


def _bitonic_sort_desc(x):
    """Descending bitonic sort of x (N, M) along axis 0. N must be a power of 2."""
    n = x.shape[0]
    if n <= 1:
        return x
    assert n & (n - 1) == 0, "bitonic sort needs a power-of-two row count"
    row = lax.broadcasted_iota(jnp.int32, (n, 1), 0)
    k = 2
    while k <= n:
        j = k // 2
        while j >= 1:
            # partner[i] = x[i XOR j]. The wrapped rows of each roll are never
            # selected: bit j of i decides which direction stays in-bounds.
            up = pltpu.roll(x, n - j, axis=0)      # up[i] = x[(i + j) % n]
            dn = pltpu.roll(x, j, axis=0)          # dn[i] = x[(i - j) % n]
            bit_lo = (row & j) == 0                # partner lies at i + j
            partner = jnp.where(bit_lo, up, dn)
            desc_blk = (row & k) == 0              # this 2k-block sorts descending
            take_max = bit_lo == desc_blk
            x = jnp.where(take_max,
                          jnp.maximum(x, partner),
                          jnp.minimum(x, partner))
            j //= 2
        k *= 2
    return x


def _swd_proj_kernel(p1_ref, p2_ref, proj_ref, out_ref, q1_acc, q2_acc,
                     *, n, n_rows, n_pad, tm, m_g, out_cols):
    r = pl.program_id(1)
    k = pl.program_id(2)

    # Fresh accumulators at the first (row, K) step of each column group.
    @pl.when((r == 0) & (k == 0))
    def _():
        q1_acc[...] = jnp.zeros_like(q1_acc)
        q2_acc[...] = jnp.zeros_like(q2_acc)

    # Accumulate this row block's projection over the K tiles. Operands stay
    # in the caller's dtype (bf16-friendly MXU); the accumulator is f32.
    pr = proj_ref[0]                                   # (tk, m_g)
    row0 = pl.multiple_of(r * tm, tm)
    q1_acc[pl.ds(row0, tm), :] += jnp.dot(
        p1_ref[...], pr, preferred_element_type=jnp.float32)
    q2_acc[pl.ds(row0, tm), :] += jnp.dot(
        p2_ref[...], pr, preferred_element_type=jnp.float32)

    # Last (row, K) step of this group: fused sort of [q1 | q2] along lanes,
    # then per-column squared-difference sums.
    @pl.when((r == pl.num_programs(1) - 1) & (k == pl.num_programs(2) - 1))
    def _():
        qcat = jnp.concatenate([q1_acc[...], q2_acc[...]], axis=1)   # (n_rows, 2*m_g)
        if n_rows < n_pad:
            fill = jnp.full((n_pad - n_rows, 2 * m_g), _NEG_FILL, jnp.float32)
            qcat = jnp.concatenate([qcat, fill], axis=0)             # (n_pad, 2*m_g)
        if n != n_pad:
            # Rows >= n are padding (zero rows of the padded inputs); force them
            # to the fill value so they sink to the bottom of both halves and
            # contribute (fill - fill)^2 == 0.
            ridx = lax.broadcasted_iota(jnp.int32, (n_pad, 1), 0)
            qcat = jnp.where(ridx < n, qcat, _NEG_FILL)
        s = _bitonic_sort_desc(qcat)
        d = s[:, :m_g] - s[:, m_g:]
        colsum = jnp.sum(d * d, axis=0, keepdims=True)               # (1, m_g)
        if out_cols > m_g:
            colsum = jnp.concatenate(
                [colsum, jnp.zeros((1, out_cols - m_g), jnp.float32)], axis=1)
        out_ref[...] = colsum                                        # (1, out_cols)


def _swd_noproj_kernel(p1_ref, p2_ref, out_ref, *, n, n_pad):
    # C == 1 path: no projection, rarely taken. Lane utilization on the
    # (n_pad, 2) sort tile is poor, but the branch is rare — kept simple.
    q1 = p1_ref[...].astype(jnp.float32)
    q2 = p2_ref[...].astype(jnp.float32)
    c = q1.shape[1]
    qcat = jnp.concatenate([q1, q2], axis=1)
    if n_pad != n:
        fill = jnp.full((n_pad - n, 2 * c), _NEG_FILL, jnp.float32)
        qcat = jnp.concatenate([qcat, fill], axis=0)
    s = _bitonic_sort_desc(qcat)
    d = s[:, :c] - s[:, c:]
    col = jnp.sum(d * d, axis=0, keepdims=True)
    out_ref[...] = jnp.sum(col, axis=1, keepdims=True) * (1.0 / float(n * c))


def sliced_wasserstein_discrepancy(p1, p2, key, num_proj=128,
                                   block_m=512, block_k=512, num_col_groups=2):
    """JAX/Pallas equivalent of SlicedWassersteinDiscrepancy.forward.

    Pass bf16 `p1`/`p2` for full MXU throughput; accumulation is f32 either way.
    """
    n, c = p1.shape
    assert p2.shape == (n, c)
    vmem_limit = _vmem_limit_bytes()

    if c <= 1:
        n_pad = pl.next_power_of_2(n)
        kernel = functools.partial(_swd_noproj_kernel, n=n, n_pad=n_pad)
        out = pl.pallas_call(
            kernel,
            out_shape=jax.ShapeDtypeStruct((1, 1), jnp.float32),
            in_specs=[pl.BlockSpec(memory_space=pltpu.MemorySpace.VMEM)] * 2,
            out_specs=pl.BlockSpec(memory_space=pltpu.MemorySpace.VMEM),
            compiler_params=pltpu.CompilerParams(vmem_limit_bytes=vmem_limit),
        )(p1, p2)
        return out[0, 0]

    m = num_proj
    n_g = num_col_groups
    assert m % n_g == 0, "num_proj must be divisible by num_col_groups"
    m_g = m // n_g
    out_cols = pl.cdiv(m_g, 128) * 128        # lane-dense (128-multiple) output block

    # Row / contraction tiling. The bitonic sort needs a power-of-two height;
    # for N just above a power of two the sort work nearly doubles (known cost).
    n_pad = pl.next_power_of_2(n)
    tm = min(block_m, n_pad)                  # tm divides n_pad (both powers of 2)
    n_r = pl.cdiv(n, tm)
    n_rows = n_r * tm                         # <= n_pad
    if c > block_k:
        assert block_k % 128 == 0, "block_k must be a multiple of 128 when tiling C"
        tk = block_k
    else:
        tk = c
    n_k = pl.cdiv(c, tk)
    c_pad = n_k * tk

    # Projection sampling + normalization stays in plain JAX (mirrors
    # torch.distributions.Normal(0,1).sample + rsqrt column normalization).
    proj = jax.random.normal(key, (c, m), dtype=jnp.float32)
    proj = proj * lax.rsqrt(jnp.sum(proj * proj, axis=0, keepdims=True))
    proj = proj.astype(p1.dtype)              # feed the MXU in the input dtype

    # Zero-pad rows / contraction only when the tiling requires it (zero rows
    # and zero K-columns add nothing to the matmul; the padded rows are masked
    # to the sort fill value inside the kernel). No full-array concat/cast.
    if n_rows != n or c_pad != c:
        p1 = jnp.pad(p1, ((0, n_rows - n), (0, c_pad - c)))
        p2 = jnp.pad(p2, ((0, n_rows - n), (0, c_pad - c)))
    if c_pad != c:
        proj = jnp.pad(proj, ((0, c_pad - c), (0, 0)))
    # (group, K, group-columns) layout so each group's proj block is lane-aligned.
    proj = proj.reshape(c_pad, n_g, m_g).transpose(1, 0, 2)

    kernel = functools.partial(
        _swd_proj_kernel, n=n, n_rows=n_rows, n_pad=n_pad, tm=tm, m_g=m_g,
        out_cols=out_cols)

    out = pl.pallas_call(
        kernel,
        out_shape=jax.ShapeDtypeStruct((1, n_g * out_cols), jnp.float32),
        grid=(n_g, n_r, n_k),
        in_specs=[
            pl.BlockSpec((tm, tk), lambda g, r, k: (r, k)),
            pl.BlockSpec((tm, tk), lambda g, r, k: (r, k)),
            pl.BlockSpec((1, tk, m_g), lambda g, r, k: (g, k, 0)),
        ],
        out_specs=pl.BlockSpec((1, out_cols), lambda g, r, k: (0, g)),
        scratch_shapes=[
            pltpu.VMEM((n_rows, m_g), jnp.float32),   # q1 accumulator (group slice)
            pltpu.VMEM((n_rows, m_g), jnp.float32),   # q2 accumulator (group slice)
        ],
        compiler_params=pltpu.CompilerParams(
            dimension_semantics=("parallel", "arbitrary", "arbitrary"),
            vmem_limit_bytes=vmem_limit,
        ),
    )(p1, p2, proj)

    # Each group wrote its per-column squared-difference sums (zero-padded to a
    # 128-lane block); finish the mean over all n * num_proj entries here.
    return jnp.sum(out) * (1.0 / float(n * m))


def _reference(p1, p2, key, num_proj=128):
    """Pure-JAX reference for correctness checking."""
    p1 = p1.astype(jnp.float32)
    p2 = p2.astype(jnp.float32)
    if p1.shape[1] > 1:
        proj = jax.random.normal(key, (p1.shape[1], num_proj), dtype=jnp.float32)
        proj = proj * lax.rsqrt(jnp.sum(proj * proj, axis=0, keepdims=True))
        p1 = jnp.dot(p1, proj, precision=lax.Precision.HIGHEST)
        p2 = jnp.dot(p2, proj, precision=lax.Precision.HIGHEST)
    p1 = -jnp.sort(-p1, axis=0)   # descending sort along axis 0
    p2 = -jnp.sort(-p2, axis=0)
    return jnp.mean((p1 - p2) ** 2)


if __name__ == "__main__":
    base_key = jax.random.PRNGKey(0)

    def run_case(n, c, block_k=512):
        kp1, kp2, kproj = jax.random.split(
            jax.random.fold_in(base_key, n * 1000 + c), 3)
        p1 = jax.random.normal(kp1, (n, c), dtype=jnp.float32)
        p2 = jax.random.normal(kp2, (n, c), dtype=jnp.float32)
        got = jax.block_until_ready(
            sliced_wasserstein_discrepancy(p1, p2, kproj, block_k=block_k))
        want = _reference(p1, p2, kproj)
        # Tolerance covers MXU f32-emulation vs XLA matmul rounding differences.
        assert jnp.allclose(got, want, rtol=1e-2, atol=1e-6), (n, c, got, want)
        return got

    run_case(16, 32)                  # power-of-two N, single K tile
    run_case(13, 40)                  # non-power-of-two N -> _NEG_FILL row padding
    run_case(32, 200, block_k=128)    # multi-K-tile accumulation + zero-padded C

    print("KERNEL_OK")
</pallas_src>

<mosaic_0001>
module attributes {stable_mosaic.version = 11 : i64} {
  func.func @_swd_proj_kernel(%arg0: i32, %arg1: i32, %arg2: i32, %arg3: memref<16x32xf32, #tpu.memory_space<vmem>>, %arg4: memref<16x32xf32, #tpu.memory_space<vmem>>, %arg5: memref<1x32x64xf32, #tpu.memory_space<vmem>>, %arg6: memref<1x128xf32, #tpu.memory_space<vmem>>, %arg7: memref<16x64xf32, #tpu.memory_space<vmem>>, %arg8: memref<16x64xf32, #tpu.memory_space<vmem>>) attributes {dimension_semantics = [#tpu.dimension_semantics<parallel>, #tpu.dimension_semantics<arbitrary>, #tpu.dimension_semantics<arbitrary>], iteration_bounds = array<i64: 2, 1, 1>, scalar_prefetch = 0 : i64, scratch_operands = 2 : i64, tpu.core_type = #tpu.core_type<tc>, window_params = [{transform_indices = @transform_0, window_bounds = array<i64: 16, 32>}, {transform_indices = @transform_1, window_bounds = array<i64: 16, 32>}, {transform_indices = @transform_2, window_bounds = array<i64: 1, 32, 64>}, {transform_indices = @transform_3, window_bounds = array<i64: 1, 128>}]} {
    %c0_i32 = arith.constant 0 : i32
    %0 = arith.cmpi eq, %arg1, %c0_i32 : i32
    %c0_i32_0 = arith.constant 0 : i32
    %1 = arith.cmpi eq, %arg2, %c0_i32_0 : i32
    %2 = arith.andi %0, %1 : i1
    %3 = arith.extui %2 : i1 to i32
    %c0_i32_1 = arith.constant 0 : i32
    %4 = arith.cmpi ne, %3, %c0_i32_1 : i32
    scf.if %4 {
      %cst_16 = arith.constant 0.000000e+00 : f32
      %28 = vector.broadcast %cst_16 : f32 to vector<16x64xf32>
      %c0_17 = arith.constant 0 : index
      %c0_18 = arith.constant 0 : index
      %29 = vector.load %arg7[%c0_17, %c0_18] : memref<16x64xf32, #tpu.memory_space<vmem>>, vector<16x64xf32>
      tpu.vector_store %arg7[%c0_17, %c0_18], %28 {strides = array<i32>} : memref<16x64xf32, #tpu.memory_space<vmem>>, vector<16x64xf32>,
      %cst_19 = arith.constant 0.000000e+00 : f32
      %30 = vector.broadcast %cst_19 : f32 to vector<16x64xf32>
      %c0_20 = arith.constant 0 : index
      %c0_21 = arith.constant 0 : index
      %31 = vector.load %arg8[%c0_20, %c0_21] : memref<16x64xf32, #tpu.memory_space<vmem>>, vector<16x64xf32>
      tpu.vector_store %arg8[%c0_20, %c0_21], %30 {strides = array<i32>} : memref<16x64xf32, #tpu.memory_space<vmem>>, vector<16x64xf32>,
    } else {
    }
    %c0 = arith.constant 0 : index
    %c0_2 = arith.constant 0 : index
    %c0_3 = arith.constant 0 : index
    %5 = vector.load %arg5[%c0, %c0_2, %c0_3] : memref<1x32x64xf32, #tpu.memory_space<vmem>>, vector<1x32x64xf32>
    %6 = vector.shape_cast %5 : vector<1x32x64xf32> to vector<32x64xf32>
    %c16_i32 = arith.constant 16 : i32
    %7 = arith.muli %arg1, %c16_i32 : i32
    %8 = tpu.assume_multiple %7, 16 : i32
    %9 = arith.index_cast %8 : i32 to index
    %c0_4 = arith.constant 0 : index
    %10 = vector.load %arg7[%9, %c0_4] : memref<16x64xf32, #tpu.memory_space<vmem>>, vector<16x64xf32>
    %c0_5 = arith.constant 0 : index
    %c0_6 = arith.constant 0 : index
    %11 = vector.load %arg3[%c0_5, %c0_6] : memref<16x32xf32, #tpu.memory_space<vmem>>, vector<16x32xf32>
    %cst = arith.constant dense<0.000000e+00> : vector<16x64xf32>
    %12 = tpu.matmul %11, %6, %cst {dimension_numbers = #tpu.dot_dimension_numbers<[1], [0], [0], [1], [0, 0, 1, 1], [], []>} : vector<16x32xf32>, vector<32x64xf32>, vector<16x64xf32> -> vector<16x64xf32>
    %13 = arith.addf %10, %12 : vector<16x64xf32>
    %14 = arith.index_cast %8 : i32 to index
    %c0_7 = arith.constant 0 : index
    %15 = vector.load %arg7[%14, %c0_7] : memref<16x64xf32, #tpu.memory_space<vmem>>, vector<16x64xf32>
    tpu.vector_store %arg7[%14, %c0_7], %13 {strides = array<i32>} : memref<16x64xf32, #tpu.memory_space<vmem>>, vector<16x64xf32>,
    %16 = arith.index_cast %8 : i32 to index
    %c0_8 = arith.constant 0 : index
    %17 = vector.load %arg8[%16, %c0_8] : memref<16x64xf32, #tpu.memory_space<vmem>>, vector<16x64xf32>
    %c0_9 = arith.constant 0 : index
    %c0_10 = arith.constant 0 : index
    %18 = vector.load %arg4[%c0_9, %c0_10] : memref<16x32xf32, #tpu.memory_space<vmem>>, vector<16x32xf32>
    %cst_11 = arith.constant dense<0.000000e+00> : vector<16x64xf32>
    %19 = tpu.matmul %18, %6, %cst_11 {dimension_numbers = #tpu.dot_dimension_numbers<[1], [0], [0], [1], [0, 0, 1, 1], [], []>} : vector<16x32xf32>, vector<32x64xf32>, vector<16x64xf32> -> vector<16x64xf32>
    %20 = arith.addf %17, %19 : vector<16x64xf32>
    %21 = arith.index_cast %8 : i32 to index
    %c0_12 = arith.constant 0 : index
    %22 = vector.load %arg8[%21, %c0_12] : memref<16x64xf32, #tpu.memory_space<vmem>>, vector<16x64xf32>
    tpu.vector_store %arg8[%21, %c0_12], %20 {strides = array<i32>} : memref<16x64xf32, #tpu.memory_space<vmem>>, vector<16x64xf32>,
    %c0_i32_13 = arith.constant 0 : i32
    %23 = arith.cmpi eq, %arg1, %c0_i32_13 : i32
    %c0_i32_14 = arith.constant 0 : i32
    %24 = arith.cmpi eq, %arg2, %c0_i32_14 : i32
    %25 = arith.andi %23, %24 : i1
    %26 = arith.extui %25 : i1 to i32
    %c0_i32_15 = arith.constant 0 : i32
    %27 = arith.cmpi ne, %26, %c0_i32_15 : i32
    scf.if %27 {
      %c0_16 = arith.constant 0 : index
      %c0_17 = arith.constant 0 : index
      %28 = vector.load %arg7[%c0_16, %c0_17] : memref<16x64xf32, #tpu.memory_space<vmem>>, vector<16x64xf32>
      %c0_18 = arith.constant 0 : index
      %c0_19 = arith.constant 0 : index
      %29 = vector.load %arg8[%c0_18, %c0_19] : memref<16x64xf32, #tpu.memory_space<vmem>>, vector<16x64xf32>
      %30 = tpu.concatenate %28, %29 in 1 : vector<16x64xf32>, vector<16x64xf32> -> vector<16x128xf32>
      %31 = tpu.iota {dimensions = array<i32: 0>} : vector<16x1xi32>
      %c15_i32 = arith.constant 15 : i32
      %32 = tpu.dynamic_rotate %30 by %c15_i32 dim 0 : vector<16x128xf32>, i32 -> vector<16x128xf32>
      %c1_i32 = arith.constant 1 : i32
      %33 = tpu.dynamic_rotate %30 by %c1_i32 dim 0 : vector<16x128xf32>, i32 -> vector<16x128xf32>
      %c1_i32_20 = arith.constant 1 : i32
      %34 = vector.broadcast %c1_i32_20 : i32 to vector<16x1xi32>
      %35 = arith.andi %31, %34 : vector<16x1xi32>
      %c0_i32_21 = arith.constant 0 : i32
      %36 = vector.broadcast %c0_i32_21 : i32 to vector<16x1xi32>
      %37 = arith.cmpi eq, %35, %36 : vector<16x1xi32>
      %38 = vector.shape_cast %37 : vector<16x1xi1> to vector<16x1xi1>
      %39 = vector.broadcast %38 : vector<16x1xi1> to vector<16x128xi1>
      %40 = arith.select %39, %32, %33 : vector<16x128xi1>, vector<16x128xf32>
      %c2_i32 = arith.constant 2 : i32
      %41 = vector.broadcast %c2_i32 : i32 to vector<16x1xi32>
      %42 = arith.andi %31, %41 : vector<16x1xi32>
      %c0_i32_22 = arith.constant 0 : i32
      %43 = vector.broadcast %c0_i32_22 : i32 to vector<16x1xi32>
      %44 = arith.cmpi eq, %42, %43 : vector<16x1xi32>
      %45 = arith.xori %37, %44 : vector<16x1xi1>
      %cst_23 = arith.constant dense<true> : vector<16x1xi1>
      %46 = arith.xori %45, %cst_23 : vector<16x1xi1>
      %47 = arith.maximumf %30, %40 : vector<16x128xf32>
      %48 = arith.minimumf %30, %40 : vector<16x128xf32>
      %49 = vector.shape_cast %46 : vector<16x1xi1> to vector<16x1xi1>
      %50 = vector.broadcast %49 : vector<16x1xi1> to vector<16x128xi1>
      %51 = arith.select %50, %47, %48 : vector<16x128xi1>, vector<16x128xf32>
      %c14_i32 = arith.constant 14 : i32
      %52 = tpu.dynamic_rotate %51 by %c14_i32 dim 0 : vector<16x128xf32>, i32 -> vector<16x128xf32>
      %c2_i32_24 = arith.constant 2 : i32
      %53 = tpu.dynamic_rotate %51 by %c2_i32_24 dim 0 : vector<16x128xf32>, i32 -> vector<16x128xf32>
      %c2_i32_25 = arith.constant 2 : i32
      %54 = vector.broadcast %c2_i32_25 : i32 to vector<16x1xi32>
      %55 = arith.andi %31, %54 : vector<16x1xi32>
      %c0_i32_26 = arith.constant 0 : i32
      %56 = vector.broadcast %c0_i32_26 : i32 to vector<16x1xi32>
      %57 = arith.cmpi eq, %55, %56 : vector<16x1xi32>
      %58 = vector.shape_cast %57 : vector<16x1xi1> to vector<16x1xi1>
      %59 = vector.broadcast %58 : vector<16x1xi1> to vector<16x128xi1>
      %60 = arith.select %59, %52, %53 : vector<16x128xi1>, vector<16x128xf32>
      %c4_i32 = arith.constant 4 : i32
      %61 = vector.broadcast %c4_i32 : i32 to vector<16x1xi32>
      %62 = arith.andi %31, %61 : vector<16x1xi32>
      %c0_i32_27 = arith.constant 0 : i32
      %63 = vector.broadcast %c0_i32_27 : i32 to vector<16x1xi32>
      %64 = arith.cmpi eq, %62, %63 : vector<16x1xi32>
      %65 = arith.xori %57, %64 : vector<16x1xi1>
      %cst_28 = arith.constant dense<true> : vector<16x1xi1>
      %66 = arith.xori %65, %cst_28 : vector<16x1xi1>
      %67 = arith.maximumf %51, %60 : vector<16x128xf32>
      %68 = arith.minimumf %51, %60 : vector<16x128xf32>
      %69 = vector.shape_cast %66 : vector<16x1xi1> to vector<16x1xi1>
      %70 = vector.broadcast %69 : vector<16x1xi1> to vector<16x128xi1>
      %71 = arith.select %70, %67, %68 : vector<16x128xi1>, vector<16x128xf32>
      %c15_i32_29 = arith.constant 15 : i32
      %72 = tpu.dynamic_rotate %71 by %c15_i32_29 dim 0 : vector<16x128xf32>, i32 -> vector<16x128xf32>
      %c1_i32_30 = arith.constant 1 : i32
      %73 = tpu.dynamic_rotate %71 by %c1_i32_30 dim 0 : vector<16x128xf32>, i32 -> vector<16x128xf32>
      %c1_i32_31 = arith.constant 1 : i32
      %74 = vector.broadcast %c1_i32_31 : i32 to vector<16x1xi32>
      %75 = arith.andi %31, %74 : vector<16x1xi32>
      %c0_i32_32 = arith.constant 0 : i32
      %76 = vector.broadcast %c0_i32_32 : i32 to vector<16x1xi32>
      %77 = arith.cmpi eq, %75, %76 : vector<16x1xi32>
      %78 = vector.shape_cast %77 : vector<16x1xi1> to vector<16x1xi1>
      %79 = vector.broadcast %78 : vector<16x1xi1> to vector<16x128xi1>
      %80 = arith.select %79, %72, %73 : vector<16x128xi1>, vector<16x128xf32>
      %c4_i32_33 = arith.constant 4 : i32
      %81 = vector.broadcast %c4_i32_33 : i32 to vector<16x1xi32>
      %82 = arith.andi %31, %81 : vector<16x1xi32>
      %c0_i32_34 = arith.constant 0 : i32
      %83 = vector.broadcast %c0_i32_34 : i32 to vector<16x1xi32>
      %84 = arith.cmpi eq, %82, %83 : vector<16x1xi32>
      %85 = arith.xori %77, %84 : vector<16x1xi1>
      %cst_35 = arith.constant dense<true> : vector<16x1xi1>
      %86 = arith.xori %85, %cst_35 : vector<16x1xi1>
      %87 = arith.maximumf %71, %80 : vector<16x128xf32>
      %88 = arith.minimumf %71, %80 : vector<16x128xf32>
      %89 = vector.shape_cast %86 : vector<16x1xi1> to vector<16x1xi1>
      %90 = vector.broadcast %89 : vector<16x1xi1> to vector<16x128xi1>
      %91 = arith.select %90, %87, %88 : vector<16x128xi1>, vector<16x128xf32>
      %c12_i32 = arith.constant 12 : i32
      %92 = tpu.dynamic_rotate %91 by %c12_i32 dim 0 : vector<16x128xf32>, i32 -> vector<16x128xf32>
      %c4_i32_36 = arith.constant 4 : i32
      %93 = tpu.dynamic_rotate %91 by %c4_i32_36 dim 0 : vector<16x128xf32>, i32 -> vector<16x128xf32>
      %c4_i32_37 = arith.constant 4 : i32
      %94 = vector.broadcast %c4_i32_37 : i32 to vector<16x1xi32>
      %95 = arith.andi %31, %94 : vector<16x1xi32>
      %c0_i32_38 = arith.constant 0 : i32
      %96 = vector.broadcast %c0_i32_38 : i32 to vector<16x1xi32>
      %97 = arith.cmpi eq, %95, %96 : vector<16x1xi32>
      %98 = vector.shape_cast %97 : vector<16x1xi1> to vector<16x1xi1>
      %99 = vector.broadcast %98 : vector<16x1xi1> to vector<16x128xi1>
      %100 = arith.select %99, %92, %93 : vector<16x128xi1>, vector<16x128xf32>
      %c8_i32 = arith.constant 8 : i32
      %101 = vector.broadcast %c8_i32 : i32 to vector<16x1xi32>
      %102 = arith.andi %31, %101 : vector<16x1xi32>
      %c0_i32_39 = arith.constant 0 : i32
      %103 = vector.broadcast %c0_i32_39 : i32 to vector<16x1xi32>
      %104 = arith.cmpi eq, %102, %103 : vector<16x1xi32>
      %105 = arith.xori %97, %104 : vector<16x1xi1>
      %cst_40 = arith.constant dense<true> : vector<16x1xi1>
      %106 = arith.xori %105, %cst_40 : vector<16x1xi1>
      %107 = arith.maximumf %91, %100 : vector<16x128xf32>
      %108 = arith.minimumf %91, %100 : vector<16x128xf32>
      %109 = vector.shape_cast %106 : vector<16x1xi1> to vector<16x1xi1>
      %110 = vector.broadcast %109 : vector<16x1xi1> to vector<16x128xi1>
      %111 = arith.select %110, %107, %108 : vector<16x128xi1>, vector<16x128xf32>
      %c14_i32_41 = arith.constant 14 : i32
      %112 = tpu.dynamic_rotate %111 by %c14_i32_41 dim 0 : vector<16x128xf32>, i32 -> vector<16x128xf32>
      %c2_i32_42 = arith.constant 2 : i32
      %113 = tpu.dynamic_rotate %111 by %c2_i32_42 dim 0 : vector<16x128xf32>, i32 -> vector<16x128xf32>
      %c2_i32_43 = arith.constant 2 : i32
      %114 = vector.broadcast %c2_i32_43 : i32 to vector<16x1xi32>
      %115 = arith.andi %31, %114 : vector<16x1xi32>
      %c0_i32_44 = arith.constant 0 : i32
      %116 = vector.broadcast %c0_i32_44 : i32 to vector<16x1xi32>
      %117 = arith.cmpi eq, %115, %116 : vector<16x1xi32>
      %118 = vector.shape_cast %117 : vector<16x1xi1> to vector<16x1xi1>
      %119 = vector.broadcast %118 : vector<16x1xi1> to vector<16x128xi1>
      %120 = arith.select %119, %112, %113 : vector<16x128xi1>, vector<16x128xf32>
      %c8_i32_45 = arith.constant 8 : i32
      %121 = vector.broadcast %c8_i32_45 : i32 to vector<16x1xi32>
      %122 = arith.andi %31, %121 : vector<16x1xi32>
      %c0_i32_46 = arith.constant 0 : i32
      %123 = vector.broadcast %c0_i32_46 : i32 to vector<16x1xi32>
      %124 = arith.cmpi eq, %122, %123 : vector<16x1xi32>
      %125 = arith.xori %117, %124 : vector<16x1xi1>
      %cst_47 = arith.constant dense<true> : vector<16x1xi1>
      %126 = arith.xori %125, %cst_47 : vector<16x1xi1>
      %127 = arith.maximumf %111, %120 : vector<16x128xf32>
      %128 = arith.minimumf %111, %120 : vector<16x128xf32>
      %129 = vector.shape_cast %126 : vector<16x1xi1> to vector<16x1xi1>
      %130 = vector.broadcast %129 : vector<16x1xi1> to vector<16x128xi1>
      %131 = arith.select %130, %127, %128 : vector<16x128xi1>, vector<16x128xf32>
      %c15_i32_48 = arith.constant 15 : i32
      %132 = tpu.dynamic_rotate %131 by %c15_i32_48 dim 0 : vector<16x128xf32>, i32 -> vector<16x128xf32>
      %c1_i32_49 = arith.constant 1 : i32
      %133 = tpu.dynamic_rotate %131 by %c1_i32_49 dim 0 : vector<16x128xf32>, i32 -> vector<16x128xf32>
      %c1_i32_50 = arith.constant 1 : i32
      %134 = vector.broadcast %c1_i32_50 : i32 to vector<16x1xi32>
      %135 = arith.andi %31, %134 : vector<16x1xi32>
      %c0_i32_51 = arith.constant 0 : i32
      %136 = vector.broadcast %c0_i32_51 : i32 to vector<16x1xi32>
      %137 = arith.cmpi eq, %135, %136 : vector<16x1xi32>
      %138 = vector.shape_cast %137 : vector<16x1xi1> to vector<16x1xi1>
      %139 = vector.broadcast %138 : vector<16x1xi1> to vector<16x128xi1>
      %140 = arith.select %139, %132, %133 : vector<16x128xi1>, vector<16x128xf32>
      %c8_i32_52 = arith.constant 8 : i32
      %141 = vector.broadcast %c8_i32_52 : i32 to vector<16x1xi32>
      %142 = arith.andi %31, %141 : vector<16x1xi32>
      %c0_i32_53 = arith.constant 0 : i32
      %143 = vector.broadcast %c0_i32_53 : i32 to vector<16x1xi32>
      %144 = arith.cmpi eq, %142, %143 : vector<16x1xi32>
      %145 = arith.xori %137, %144 : vector<16x1xi1>
      %cst_54 = arith.constant dense<true> : vector<16x1xi1>
      %146 = arith.xori %145, %cst_54 : vector<16x1xi1>
      %147 = arith.maximumf %131, %140 : vector<16x128xf32>
      %148 = arith.minimumf %131, %140 : vector<16x128xf32>
      %149 = vector.shape_cast %146 : vector<16x1xi1> to vector<16x1xi1>
      %150 = vector.broadcast %149 : vector<16x1xi1> to vector<16x128xi1>
      %151 = arith.select %150, %147, %148 : vector<16x128xi1>, vector<16x128xf32>
      %c8_i32_55 = arith.constant 8 : i32
      %152 = tpu.dynamic_rotate %151 by %c8_i32_55 dim 0 : vector<16x128xf32>, i32 -> vector<16x128xf32>
      %c8_i32_56 = arith.constant 8 : i32
      %153 = tpu.dynamic_rotate %151 by %c8_i32_56 dim 0 : vector<16x128xf32>, i32 -> vector<16x128xf32>
      %c8_i32_57 = arith.constant 8 : i32
      %154 = vector.broadcast %c8_i32_57 : i32 to vector<16x1xi32>
      %155 = arith.andi %31, %154 : vector<16x1xi32>
      %c0_i32_58 = arith.constant 0 : i32
      %156 = vector.broadcast %c0_i32_58 : i32 to vector<16x1xi32>
      %157 = arith.cmpi eq, %155, %156 : vector<16x1xi32>
      %158 = vector.shape_cast %157 : vector<16x1xi1> to vector<16x1xi1>
      %159 = vector.broadcast %158 : vector<16x1xi1> to vector<16x128xi1>
      %160 = arith.select %159, %152, %153 : vector<16x128xi1>, vector<16x128xf32>
      %c16_i32_59 = arith.constant 16 : i32
      %161 = vector.broadcast %c16_i32_59 : i32 to vector<16x1xi32>
      %162 = arith.andi %31, %161 : vector<16x1xi32>
      %c0_i32_60 = arith.constant 0 : i32
      %163 = vector.broadcast %c0_i32_60 : i32 to vector<16x1xi32>
      %164 = arith.cmpi eq, %162, %163 : vector<16x1xi32>
      %165 = arith.xori %157, %164 : vector<16x1xi1>
      %cst_61 = arith.constant dense<true> : vector<16x1xi1>
      %166 = arith.xori %165, %cst_61 : vector<16x1xi1>
      %167 = arith.maximumf %151, %160 : vector<16x128xf32>
      %168 = arith.minimumf %151, %160 : vector<16x128xf32>
      %169 = vector.shape_cast %166 : vector<16x1xi1> to vector<16x1xi1>
      %170 = vector.broadcast %169 : vector<16x1xi1> to vector<16x128xi1>
      %171 = arith.select %170, %167, %168 : vector<16x128xi1>, vector<16x128xf32>
      %c12_i32_62 = arith.constant 12 : i32
      %172 = tpu.dynamic_rotate %171 by %c12_i32_62 dim 0 : vector<16x128xf32>, i32 -> vector<16x128xf32>
      %c4_i32_63 = arith.constant 4 : i32
      %173 = tpu.dynamic_rotate %171 by %c4_i32_63 dim 0 : vector<16x128xf32>, i32 -> vector<16x128xf32>
      %c4_i32_64 = arith.constant 4 : i32
      %174 = vector.broadcast %c4_i32_64 : i32 to vector<16x1xi32>
      %175 = arith.andi %31, %174 : vector<16x1xi32>
      %c0_i32_65 = arith.constant 0 : i32
      %176 = vector.broadcast %c0_i32_65 : i32 to vector<16x1xi32>
      %177 = arith.cmpi eq, %175, %176 : vector<16x1xi32>
      %178 = vector.shape_cast %177 : vector<16x1xi1> to vector<16x1xi1>
      %179 = vector.broadcast %178 : vector<16x1xi1> to vector<16x128xi1>
      %180 = arith.select %179, %172, %173 : vector<16x128xi1>, vector<16x128xf32>
      %c16_i32_66 = arith.constant 16 : i32
      %181 = vector.broadcast %c16_i32_66 : i32 to vector<16x1xi32>
      %182 = arith.andi %31, %181 : vector<16x1xi32>
      %c0_i32_67 = arith.constant 0 : i32
      %183 = vector.broadcast %c0_i32_67 : i32 to vector<16x1xi32>
      %184 = arith.cmpi eq, %182, %183 : vector<16x1xi32>
      %185 = arith.xori %177, %184 : vector<16x1xi1>
      %cst_68 = arith.constant dense<true> : vector<16x1xi1>
      %186 = arith.xori %185, %cst_68 : vector<16x1xi1>
      %187 = arith.maximumf %171, %180 : vector<16x128xf32>
      %188 = arith.minimumf %171, %180 : vector<16x128xf32>
      %189 = vector.shape_cast %186 : vector<16x1xi1> to vector<16x1xi1>
      %190 = vector.broadcast %189 : vector<16x1xi1> to vector<16x128xi1>
      %191 = arith.select %190, %187, %188 : vector<16x128xi1>, vector<16x128xf32>
      %c14_i32_69 = arith.constant 14 : i32
      %192 = tpu.dynamic_rotate %191 by %c14_i32_69 dim 0 : vector<16x128xf32>, i32 -> vector<16x128xf32>
      %c2_i32_70 = arith.constant 2 : i32
      %193 = tpu.dynamic_rotate %191 by %c2_i32_70 dim 0 : vector<16x128xf32>, i32 -> vector<16x128xf32>
      %c2_i32_71 = arith.constant 2 : i32
      %194 = vector.broadcast %c2_i32_71 : i32 to vector<16x1xi32>
      %195 = arith.andi %31, %194 : vector<16x1xi32>
      %c0_i32_72 = arith.constant 0 : i32
      %196 = vector.broadcast %c0_i32_72 : i32 to vector<16x1xi32>
      %197 = arith.cmpi eq, %195, %196 : vector<16x1xi32>
      %198 = vector.shape_cast %197 : vector<16x1xi1> to vector<16x1xi1>
      %199 = vector.broadcast %198 : vector<16x1xi1> to vector<16x128xi1>
      %200 = arith.select %199, %192, %193 : vector<16x128xi1>, vector<16x128xf32>
      %c16_i32_73 = arith.constant 16 : i32
      %201 = vector.broadcast %c16_i32_73 : i32 to vector<16x1xi32>
      %202 = arith.andi %31, %201 : vector<16x1xi32>
      %c0_i32_74 = arith.constant 0 : i32
      %203 = vector.broadcast %c0_i32_74 : i32 to vector<16x1xi32>
      %204 = arith.cmpi eq, %202, %203 : vector<16x1xi32>
      %205 = arith.xori %197, %204 : vector<16x1xi1>
      %cst_75 = arith.constant dense<true> : vector<16x1xi1>
      %206 = arith.xori %205, %cst_75 : vector<16x1xi1>
      %207 = arith.maximumf %191, %200 : vector<16x128xf32>
      %208 = arith.minimumf %191, %200 : vector<16x128xf32>
      %209 = vector.shape_cast %206 : vector<16x1xi1> to vector<16x1xi1>
      %210 = vector.broadcast %209 : vector<16x1xi1> to vector<16x128xi1>
      %211 = arith.select %210, %207, %208 : vector<16x128xi1>, vector<16x128xf32>
      %c15_i32_76 = arith.constant 15 : i32
      %212 = tpu.dynamic_rotate %211 by %c15_i32_76 dim 0 : vector<16x128xf32>, i32 -> vector<16x128xf32>
      %c1_i32_77 = arith.constant 1 : i32
      %213 = tpu.dynamic_rotate %211 by %c1_i32_77 dim 0 : vector<16x128xf32>, i32 -> vector<16x128xf32>
      %c1_i32_78 = arith.constant 1 : i32
      %214 = vector.broadcast %c1_i32_78 : i32 to vector<16x1xi32>
      %215 = arith.andi %31, %214 : vector<16x1xi32>
      %c0_i32_79 = arith.constant 0 : i32
      %216 = vector.broadcast %c0_i32_79 : i32 to vector<16x1xi32>
      %217 = arith.cmpi eq, %215, %216 : vector<16x1xi32>
      %218 = vector.shape_cast %217 : vector<16x1xi1> to vector<16x1xi1>
      %219 = vector.broadcast %218 : vector<16x1xi1> to vector<16x128xi1>
      %220 = arith.select %219, %212, %213 : vector<16x128xi1>, vector<16x128xf32>
      %c16_i32_80 = arith.constant 16 : i32
      %221 = vector.broadcast %c16_i32_80 : i32 to vector<16x1xi32>
      %222 = arith.andi %31, %221 : vector<16x1xi32>
      %c0_i32_81 = arith.constant 0 : i32
      %223 = vector.broadcast %c0_i32_81 : i32 to vector<16x1xi32>
      %224 = arith.cmpi eq, %222, %223 : vector<16x1xi32>
      %225 = arith.xori %217, %224 : vector<16x1xi1>
      %cst_82 = arith.constant dense<true> : vector<16x1xi1>
      %226 = arith.xori %225, %cst_82 : vector<16x1xi1>
      %227 = arith.maximumf %211, %220 : vector<16x128xf32>
      %228 = arith.minimumf %211, %220 : vector<16x128xf32>
      %229 = vector.shape_cast %226 : vector<16x1xi1> to vector<16x1xi1>
      %230 = vector.broadcast %229 : vector<16x1xi1> to vector<16x128xi1>
      %231 = arith.select %230, %227, %228 : vector<16x128xi1>, vector<16x128xf32>
      %232 = vector.extract_strided_slice %231 {offsets = [0, 0], sizes = [16, 64], strides = [1, 1]} : vector<16x128xf32> to vector<16x64xf32>
      %233 = vector.extract_strided_slice %231 {offsets = [0, 64], sizes = [16, 64], strides = [1, 1]} : vector<16x128xf32> to vector<16x64xf32>
      %234 = arith.subf %232, %233 : vector<16x64xf32>
      %235 = arith.mulf %234, %234 : vector<16x64xf32>
      %cst_83 = arith.constant dense<0.000000e+00> : vector<64xf32>
      %236 = vector.multi_reduction <add>, %235, %cst_83 [0] : vector<16x64xf32> to vector<64xf32>
      %237 = vector.shape_cast %236 : vector<64xf32> to vector<1x64xf32>
      %cst_84 = arith.constant 0.000000e+00 : f32
      %238 = vector.broadcast %cst_84 : f32 to vector<1x64xf32>
      %239 = tpu.concatenate %237, %238 in 1 : vector<1x64xf32>, vector<1x64xf32> -> vector<1x128xf32>
      %c0_85 = arith.constant 0 : index
      %c0_86 = arith.constant 0 : index
      %240 = vector.load %arg6[%c0_85, %c0_86] : memref<1x128xf32, #tpu.memory_space<vmem>>, vector<1x128xf32>
      tpu.vector_store %arg6[%c0_85, %c0_86], %239 {strides = array<i32>} : memref<1x128xf32, #tpu.memory_space<vmem>>, vector<1x128xf32>,
    } else {
    }
    return
  }
  func.func @transform_0(%arg0: i32, %arg1: i32, %arg2: i32) -> (i32, i32) {
    %c0_i32 = arith.constant 0 : i32
    return %arg1, %arg2 : i32, i32
  }
  func.func @transform_1(%arg0: i32, %arg1: i32, %arg2: i32) -> (i32, i32) {
    %c0_i32 = arith.constant 0 : i32
    return %arg1, %arg2 : i32, i32
  }
  func.func @transform_2(%arg0: i32, %arg1: i32, %arg2: i32) -> (i32, i32, i32) {
    %c0_i32 = arith.constant 0 : i32
    %c0_i32_0 = arith.constant 0 : i32
    return %arg0, %arg2, %c0_i32 : i32, i32, i32
  }
  func.func @transform_3(%arg0: i32, %arg1: i32, %arg2: i32) -> (i32, i32) {
    %c0_i32 = arith.constant 0 : i32
    %c0_i32_0 = arith.constant 0 : i32
    return %c0_i32, %arg0 : i32, i32
  }
}

</mosaic_0001>

<llo_original>
// kernel: tpu_custom_call.1
$region0: #{tpu_custom_call.1}
  #allocation0 [shape = 'u32[]', space=smem, size = 0x4, offset = 0x4, fixed_abs, tag = 'smem constant byte address 0x4 - core index']
  #allocation1 [shape = 'u32[144,128]{1,0:T(1,128)}', space=vmem, size = 0x12000, scoped, tag = 'internal scratch']
  #allocation2 [shape = 'f32[16,64]{1,0:T(8,128)}', space=vmem, size = 0x2000, scoped, tag = 'scratch operand']
  #allocation3 [shape = 'f32[16,64]{1,0:T(8,128)}', space=vmem, size = 0x2000, scoped, tag = 'scratch operand']
  %s0 = inlined_call_operand.hbm [shape: f32[16,32], index: 0, kind: input, shape index: {}]
  %s1 = inlined_call_operand.hbm [shape: f32[16,32], index: 1, kind: input, shape index: {}]
  %s2 = inlined_call_operand.hbm [shape: f32[2,32,64], index: 2, kind: input, shape index: {}]
  %s3 = inlined_call_operand.hbm [shape: f32[1,256], index: 3, kind: output, shape index: {}]
  %s4 = sld [smem:[#allocation0]]
  $region65: #{tpu_custom_call.1} parent=0
    _
  %s6 = ssub.s32 1, %s4
  %s7 = scalar_select 0, %s6, %s4
  $region1: #{tpu_custom_call.1} parent=0
    #allocation4 [shape = 'u8[8192]{0}', space=vmem, size = 0x2000, scoped, tag = 'input window, operand 0, single buffered']
    #allocation5 [shape = 's32[2]{0}', space=sflag, size = 0x8, scoped, tag = 'scoped memory for tpu_custom_call.1']
    #allocation6 [shape = 's32[2]{0}', space=sflag, size = 0x8, scoped, tag = 'scoped memory for tpu_custom_call.1']
    #allocation7 [shape = 'u8[8192]{0}', space=vmem, size = 0x2000, scoped, tag = 'input window, operand 1, single buffered']
    #allocation8 [shape = 's32[1]{0}', space=sflag, size = 0x4, scoped, tag = 'scoped memory for tpu_custom_call.1']
    #allocation9 [shape = 'u8[32768]{0}', space=vmem, size = 0x8000, scoped, tag = 'input window, operand 2']
    #allocation10 [shape = 'u8[1024]{0}', space=vmem, size = 0x400, scoped, tag = 'output window, operand 0']
    %8 = vsyncpa [#allocation5], 0
    %9 = vsyncpa [#allocation8], 0
    %10 = vsyncpa [#allocation6], 0
    %s11 = scalar_lea.sflag [#allocation6], 1
    %12 = vsyncpa %s11, 0
    loop: start=0, step=1, limit=4
    $region2: #{tpu_custom_call.1} parent=1 // loop_pre_header
      _
    $region3: #{tpu_custom_call.1} parent=1 // loop_header
      %s14 = sphi 0, %s18
      %p15 = scmp.ge.s32.totalorder %s14, 4
      %s21 = sphi 0, %s40
      %s22 = sphi 0, %s36
      %s23 = sphi 0, %s32
      %s24 = sphi 0, %s21
      %s25 = sphi 0, %s22
      %s26 = sphi 0, %s23
      %s27 = sphi 0, %s24
      %s28 = sphi 0, %s25
      %s29 = sphi 0, %s26
      %s45 = sphi 0, %s47
      %s48 = sphi 0, %s45
      %s49 = sphi 0, %s48
      %s65 = sphi 0, %s49
      %s73 = sphi 0, %s75
      %s76 = sphi 0, %s73
      %s77 = sphi 0, %s76
      %s93 = sphi 0, %s77
      %s101 = sphi 0, %s103
      %s104 = sphi 0, %s101
      %s105 = sphi 0, %s104
      %s121 = sphi 0, %s105
      %s127 = sphi 0, %s129
      %s130 = sphi 0, %s127
      %s131 = sphi 0, %s130
      %s147 = sphi 0, %s131
    $region4: #{tpu_custom_call.1} parent=1 // loop_header_branch
      %17 = sbr.rel (%p15) target = $region8
    $region5: #{tpu_custom_call.1} parent=1 // loop_body
      %s19 = ssub.s32 %s14, 1
      %s20 = ssub.s32 %s14, 2
      %s30 = sadd.s32 1, %s23
      %p31 = scmp.ge.s32.totalorder %s30, 1
      %s32 = scalar_select %p31, 0, %s30
      %s33 = sadd.s32 1, %s22
      %s34 = scalar_select %p31, %s33, %s22
      %p35 = scmp.ge.s32.totalorder %s34, 1
      %s36 = scalar_select %p35, 0, %s34
      %s37 = sadd.s32 1, %s21
      %s38 = scalar_select %p35, %s37, %s21
      %p39 = scmp.ge.s32.totalorder %s38, 2
      %s40 = scalar_select %p39, 0, %s38
      %s41 = ssub.s32 %s22, %s36
      %s42 = ssub.s32 %s23, %s32
      %s43 = sor.u32 %s41, %s42
      %p44 = scmp.eq.s32.totalorder %s43, 0
      %s46 = sadd.s32 %s45, 1
      %s47 = scalar_select %p44, %s45, %s46
      %p50 = pneg %p44
      %p51 = scmp.eq.s32.totalorder %s14, 1
      %p52 = por %p50, %p51
      %p53 = scmp.ne.s32.totalorder %s45, %s48
      %p54 = scmp.eq.s32.totalorder %s14, 0
      %p55 = por %p53, %p54
      %p56 = scmp.ne.s32.totalorder %s45, %s48
      %p57 = scmp.eq.s32.totalorder %s19, 1
      %p58 = por %p56, %p57
      %p59 = scmp.ne.s32.totalorder %s48, %s49
      %p60 = scmp.eq.s32.totalorder %s19, 0
      %p61 = por %p59, %p60
      %p62 = scmp.ne.s32.totalorder %s48, %s49
      %p63 = scmp.eq.s32.totalorder %s20, 1
      %p64 = por %p62, %p63
      %p66 = scmp.ne.s32.totalorder %s49, %s65
      %p67 = scmp.eq.s32.totalorder %s20, 0
      %p68 = por %p66, %p67
      %s69 = ssub.s32 %s22, %s36
      %s70 = ssub.s32 %s23, %s32
      %s71 = sor.u32 %s69, %s70
      %p72 = scmp.eq.s32.totalorder %s71, 0
      %s74 = sadd.s32 %s73, 1
      %s75 = scalar_select %p72, %s73, %s74
      %p78 = pneg %p72
      %p79 = scmp.eq.s32.totalorder %s14, 1
      %p80 = por %p78, %p79
      %p81 = scmp.ne.s32.totalorder %s73, %s76
      %p82 = scmp.eq.s32.totalorder %s14, 0
      %p83 = por %p81, %p82
      %p84 = scmp.ne.s32.totalorder %s73, %s76
      %p85 = scmp.eq.s32.totalorder %s19, 1
      %p86 = por %p84, %p85
      %p87 = scmp.ne.s32.totalorder %s76, %s77
      %p88 = scmp.eq.s32.totalorder %s19, 0
      %p89 = por %p87, %p88
      %p90 = scmp.ne.s32.totalorder %s76, %s77
      %p91 = scmp.eq.s32.totalorder %s20, 1
      %p92 = por %p90, %p91
      %p94 = scmp.ne.s32.totalorder %s77, %s93
      %p95 = scmp.eq.s32.totalorder %s20, 0
      %p96 = por %p94, %p95
      %s97 = ssub.s32 %s21, %s40
      %s98 = ssub.s32 %s23, %s32
      %s99 = sor.u32 %s97, %s98
      %p100 = scmp.eq.s32.totalorder %s99, 0
      %s102 = sadd.s32 %s101, 1
      %s103 = scalar_select %p100, %s101, %s102
      %p106 = pneg %p100
      %p107 = scmp.eq.s32.totalorder %s14, 1
      %p108 = por %p106, %p107
      %p109 = scmp.ne.s32.totalorder %s101, %s104
      %p110 = scmp.eq.s32.totalorder %s14, 0
      %p111 = por %p109, %p110
      %p112 = scmp.ne.s32.totalorder %s101, %s104
      %p113 = scmp.eq.s32.totalorder %s19, 1
      %p114 = por %p112, %p113
      %p115 = scmp.ne.s32.totalorder %s104, %s105
      %p116 = scmp.eq.s32.totalorder %s19, 0
      %p117 = por %p115, %p116
      %p118 = scmp.ne.s32.totalorder %s104, %s105
      %p119 = scmp.eq.s32.totalorder %s20, 1
      %p120 = por %p118, %p119
      %p122 = scmp.ne.s32.totalorder %s105, %s121
      %p123 = scmp.eq.s32.totalorder %s20, 0
      %p124 = por %p122, %p123
      %s125 = ssub.s32 %s21, %s40
      %p126 = scmp.eq.s32.totalorder %s125, 0
      %s128 = sadd.s32 %s127, 1
      %s129 = scalar_select %p126, %s127, %s128
      %p132 = pneg %p126
      %p133 = scmp.eq.s32.totalorder %s14, 1
      %p134 = por %p132, %p133
      %p135 = scmp.ne.s32.totalorder %s127, %s130
      %p136 = scmp.eq.s32.totalorder %s14, 0
      %p137 = por %p135, %p136
      %p138 = scmp.ne.s32.totalorder %s127, %s130
      %p139 = scmp.eq.s32.totalorder %s19, 1
      %p140 = por %p138, %p139
      %p141 = scmp.ne.s32.totalorder %s130, %s131
      %p142 = scmp.eq.s32.totalorder %s19, 0
      %p143 = por %p141, %p142
      %p144 = scmp.ne.s32.totalorder %s130, %s131
      %p145 = scmp.eq.s32.totalorder %s20, 1
      %p146 = por %p144, %p145
      %p148 = scmp.ne.s32.totalorder %s131, %s147
      %p149 = scmp.eq.s32.totalorder %s20, 0
      %p150 = por %p148, %p149
      %p151 = scmp.le.s32.totalorder 1, %s14
      %p152 = scmp.lt.s32.totalorder %s14, 3
      %p153 = pnand %p151, %p152
      %p154 = pneg %p153
      // Predicated region
      $region9: #{tpu_custom_call.1} parent=5 // pred_check
        _
      $region10: #{tpu_custom_call.1} parent=5 // pred_check_branch
        %156 = sbr.rel (%p153) target = $region12
      $region11: #{tpu_custom_call.1} parent=5 // pred_region
        %s157 = ssub.s32 %s14, 1
        // Predicated region
        $region13: #{tpu_custom_call.1} parent=11 // pred_check
          %p158 = pneg %p61
        $region14: #{tpu_custom_call.1} parent=11 // pred_check_branch
          %160 = sbr.rel (%p158) target = $region16
        $region15: #{tpu_custom_call.1} parent=11 // pred_region
          %s161 = smul.u32 2, %s25
          %s163 = ssub.s32 256, 256
          %164 = vsyncadd [#allocation5], %s163
          %s165 = sadd.s32 %s26, %s161
          %s166 = smul.addr %s165, 128
          %s167 = scalar_lea.hbm %s0, %s166
          %s168 = sshll.u32 [#allocation4], 4
          %s169 = int_to_ptr.vmem [resolvable:$true] %s168
          %174 = dma.hbm_to_vmem [thread:$0]  %s167, 256, %s169, [#allocation5], 128, 128, 8
        $region16: #{tpu_custom_call.1} parent=11 // pred_fallthru
          _
        // Predicated region
        $region17: #{tpu_custom_call.1} parent=11 // pred_check
          %p175 = pneg %p89
        $region18: #{tpu_custom_call.1} parent=11 // pred_check_branch
          %177 = sbr.rel (%p175) target = $region20
        $region19: #{tpu_custom_call.1} parent=11 // pred_region
          %s178 = smul.u32 2, %s25
          %s180 = ssub.s32 256, 256
          %181 = vsyncadd [#allocation8], %s180
          %s182 = sadd.s32 %s26, %s178
          %s183 = smul.addr %s182, 128
          %s184 = scalar_lea.hbm %s1, %s183
          %s185 = sshll.u32 [#allocation7], 4
          %s186 = int_to_ptr.vmem [resolvable:$true] %s185
          %191 = dma.hbm_to_vmem [thread:$0]  %s184, 256, %s186, [#allocation8], 128, 128, 8
        $region20: #{tpu_custom_call.1} parent=11 // pred_fallthru
          _
      $region12: #{tpu_custom_call.1} parent=5 // pred_fallthru
        _
      %p192 = scmp.lt.s32.totalorder %s14, 2
      // Predicated region
      $region21: #{tpu_custom_call.1} parent=5 // pred_check
        %p193 = pneg %p192
      $region22: #{tpu_custom_call.1} parent=5 // pred_check_branch
        %195 = sbr.rel (%p193) target = $region24
      $region23: #{tpu_custom_call.1} parent=5 // pred_region
        // Predicated region
        $region25: #{tpu_custom_call.1} parent=23 // pred_check
          %p196 = pneg %p111
        $region26: #{tpu_custom_call.1} parent=23 // pred_check_branch
          %198 = sbr.rel (%p196) target = $region28
        $region27: #{tpu_custom_call.1} parent=23 // pred_region
          %s199 = sand.u32 %s14, 1
          %s200 = scalar_lea.sflag [#allocation5], %s199
          %s201 = sand.u32 %s101, 1
          %s202 = smul.addr %s201, 32
          %s203 = scalar_lea.vmem [#allocation9], %s202
          %s204 = smul.u32 4, %s23
          %s206 = ssub.s32 512, 512
          %207 = vsyncadd %s200, %s206
          %s208 = smul.addr %s21, 4
          %s209 = sadd.s32 %s204, %s208
          %s210 = smul.addr %s209, 128
          %s211 = scalar_lea.hbm %s2, %s210
          %s212 = sshll.u32 %s203, 4
          %s213 = int_to_ptr.vmem [resolvable:$true] %s212
          %218 = dma.hbm_to_vmem [thread:$0]  %s211, 512, %s213, %s200, 128, 128, 8
        $region28: #{tpu_custom_call.1} parent=23 // pred_fallthru
          _
      $region24: #{tpu_custom_call.1} parent=5 // pred_fallthru
        _
      %p219 = scmp.le.s32.totalorder 1, %s14
      %p220 = scmp.lt.s32.totalorder %s14, 3
      %p221 = pnand %p219, %p220
      %p222 = pneg %p221
      // Predicated region
      $region29: #{tpu_custom_call.1} parent=5 // pred_check
        _
      $region30: #{tpu_custom_call.1} parent=5 // pred_check_branch
        %224 = sbr.rel (%p221) target = $region32
      $region31: #{tpu_custom_call.1} parent=5 // pred_region
        %s225 = ssub.s32 %s14, 1
        // Predicated region
        $region33: #{tpu_custom_call.1} parent=31 // pred_check
          %p226 = pneg %p61
        $region34: #{tpu_custom_call.1} parent=31 // pred_check_branch
          %228 = sbr.rel (%p226) target = $region36
        $region35: #{tpu_custom_call.1} parent=31 // pred_region
          %229 = dma.done [#allocation5], 256
        $region36: #{tpu_custom_call.1} parent=31 // pred_fallthru
          _
        // Predicated region
        $region37: #{tpu_custom_call.1} parent=31 // pred_check
          %p230 = pneg %p89
        $region38: #{tpu_custom_call.1} parent=31 // pred_check_branch
          %232 = sbr.rel (%p230) target = $region40
        $region39: #{tpu_custom_call.1} parent=31 // pred_region
          %233 = dma.done [#allocation8], 256
        $region40: #{tpu_custom_call.1} parent=31 // pred_fallthru
          _
        %s234 = sand.u32 %s19, 1
        %s235 = scalar_lea.sflag [#allocation5], %s234
        %s236 = sand.u32 %s104, 1
        %s237 = smul.addr %s236, 32
        %s238 = scalar_lea.vmem [#allocation9], %s237
        // Predicated region
        $region41: #{tpu_custom_call.1} parent=31 // pred_check
          %p239 = pneg %p117
        $region42: #{tpu_custom_call.1} parent=31 // pred_check_branch
          %241 = sbr.rel (%p239) target = $region44
        $region43: #{tpu_custom_call.1} parent=31 // pred_region
          %242 = dma.done %s235, 512
        $region44: #{tpu_custom_call.1} parent=31 // pred_fallthru
          _
        %p243 = pneg %p61
        %p244 = pneg %p58
        %p245 = pneg %p89
        %p246 = pneg %p86
        %s247 = sand.u32 %s19, 1
        %s248 = scalar_lea.sflag [#allocation5], %s247
        %s249 = sand.u32 %s104, 1
        %s250 = smul.addr %s249, 32
        %s251 = scalar_lea.vmem [#allocation9], %s250
        %p252 = pneg %p117
        %p253 = pneg %p114
        %p254 = pneg %p143
        %p255 = pneg %p140
        %s256 = sand.u32 %s130, 1
        %s257 = scalar_lea.sflag [#allocation6], %s256
        %s258 = sand.u32 %s130, 1
        %s259 = scalar_lea.vmem [#allocation10], %s258
        %s260 = smul.u32 2, %s25
        %s261 = smul.u32 2, %s25
        %s262 = smul.u32 4, %s26
        %p263 = scmp.eq.s32.totalorder %s25, 0
        %p264 = scmp.eq.s32.totalorder %s26, 0
        %p265 = pnand %p263, %p264
        %p266 = pneg %p265
        // Predicated region
        $region45: #{tpu_custom_call.1} parent=31 // pred_check
          _
        $region46: #{tpu_custom_call.1} parent=31 // pred_check_branch
          %268 = sbr.rel (%p265) target = $region48
        $region47: #{tpu_custom_call.1} parent=31 // pred_region
          %vm269 = vcmask 523264
          %270 = vst.msk [vmem:[#allocation2] sm:$0xff] %vm269, 0.0
          %271 = vst.msk [vmem:[#allocation2 + $0x8] sm:$0xff] %vm269, 0.0
          %272 = vst.msk [vmem:[#allocation3] sm:$0xff] %vm269, 0.0
          %273 = vst.msk [vmem:[#allocation3 + $0x8] sm:$0xff] %vm269, 0.0
        $region48: #{tpu_custom_call.1} parent=31 // pred_fallthru
          _
        %v274 = vld [vmem:[%s238] sm:$0xff]
        %v275 = vld [vmem:[%s238 + $0x8] sm:$0xff]
        %v276 = vld [vmem:[%s238 + $0x10] sm:$0xff]
        %v277 = vld [vmem:[%s238 + $0x18] sm:$0xff]
        %s278 = smul.u32 %s25, 16
        %s279 = scalar_lea.vmem [#allocation2], %s278
        %v280 = vld [vmem:[%s279] sm:$0xff]
        %v281 = vld [vmem:[%s279 + $0x8] sm:$0xff]
        %v282 = vld [vmem:[#allocation4] sm:$0xff]
        %v283 = vld [vmem:[#allocation4 + $0x8] sm:$0xff]
        %vm284 = vcmask 261120
        %v286 = vsel %vm284, %v282, 0
        %v289 = vsel %vm284, %v283, 0
        %291 = vmatprep.subr.mxu0 0.0
        %292 = vmatpush1.msra.mxu0 0.0
        %293 = vmatprep.subr.mxu0 0.0
        %294 = vmatpush1.msra.mxu0 0.0
        %295 = vmatprep.subr.mxu0 0.0
        %296 = vmatpush1.msra.mxu0 0.0
        %297 = vmatprep.subr.mxu0 0.0
        %298 = vmatpush1.msra.mxu0 0.0
        %299 = vmatprep.subr.mxu0 0.0
        %300 = vmatpush1.msra.mxu0 0.0
        %301 = vmatprep.subr.mxu0 0.0
        %302 = vmatpush1.msra.mxu0 0.0
        %303 = vmatprep.subr.mxu0 0.0
        %304 = vmatpush1.msra.mxu0 0.0
        %305 = vmatprep.subr.mxu0 0.0
        %306 = vmatpush1.msra.mxu0 0.0
        %307 = vmatprep.subr.mxu0 0.0
        %308 = vmatpush1.msra.mxu0 0.0
        %309 = vmatprep.subr.mxu0 0.0
        %310 = vmatpush1.msra.mxu0 0.0
        %311 = vmatprep.subr.mxu0 0.0
        %312 = vmatpush1.msra.mxu0 0.0
        %313 = vmatprep.subr.mxu0 0.0
        %314 = vmatpush1.msra.mxu0 0.0
        %315 = vmatprep.subr.mxu0 0.0
        %316 = vmatpush1.msra.mxu0 %v277
        %317 = vmatprep.subr.mxu0 0.0
        %318 = vmatpush1.msra.mxu0 %v276
        %319 = vmatprep.subr.mxu0 0.0
        %320 = vmatpush1.msra.mxu0 %v275
        %321 = vmatprep.subr.mxu0 0.0
        %322 = vmatpush1.msra.mxu0 %v274
        %323 = vmatprep.subr.mxu0 0.0
        %324 = vmatpush2.msra.mxu0 0.0
        %325 = vmatprep.subr.mxu0 0.0
        %326 = vmatpush2.msra.mxu0 0.0
        %327 = vmatprep.subr.mxu0 0.0
        %328 = vmatpush2.msra.mxu0 0.0
        %329 = vmatprep.subr.mxu0 0.0
        %330 = vmatpush2.msra.mxu0 0.0
        %331 = vmatprep.subr.mxu0 0.0
        %332 = vmatpush2.msra.mxu0 0.0
        %333 = vmatprep.subr.mxu0 0.0
        %334 = vmatpush2.msra.mxu0 0.0
        %335 = vmatprep.subr.mxu0 0.0
        %336 = vmatpush2.msra.mxu0 0.0
        %337 = vmatprep.subr.mxu0 0.0
        %338 = vmatpush2.msra.mxu0 0.0
        %339 = vmatprep.subr.mxu0 0.0
        %340 = vmatpush2.msra.mxu0 0.0
        %341 = vmatprep.subr.mxu0 0.0
        %342 = vmatpush2.msra.mxu0 0.0
        %343 = vmatprep.subr.mxu0 0.0
        %344 = vmatpush2.msra.mxu0 0.0
        %345 = vmatprep.subr.mxu0 0.0
        %346 = vmatpush2.msra.mxu0 0.0
        %347 = vmatprep.subr.mxu0 0.0
        %348 = vmatpush2.msra.mxu0 0.0
        %349 = vmatprep.subr.mxu0 0.0
        %350 = vmatpush2.msra.mxu0 0.0
        %351 = vmatprep.subr.mxu0 0.0
        %352 = vmatpush2.msra.mxu0 0.0
        %353 = vmatprep.subr.mxu0 0.0
        %354 = vmatpush2.msra.mxu0 0.0
        %355 = vmatprep.mubr.f32.mxu0 0.0
        %356 = vmatmul.mubr.f32.gmra.mxu0 %v286
        %v357 = vpop.f32.mrf.mxu0
        %v358 = vadd.f32 0.0, %v357
        %v359 = vpop.f32.mrf.mxu0
        %360 = vmatprep.mubr.f32.mxu0 0.0
        %361 = vmatmul.mubr.f32.gmra.mxu0 %v289
        %v362 = vpop.f32.mrf.mxu0
        %v363 = vadd.f32 0.0, %v362
        %v364 = vpop.f32.mrf.mxu0
        %365 = vdwg.mxu0
        %v366 = vadd.f32 %v280, %v358
        %v367 = vadd.f32 %v281, %v363
        %vm368 = vcmask 523264
        %369 = vst.msk [vmem:[%s279] sm:$0xff] %vm368, %v366
        %370 = vst.msk [vmem:[%s279 + $0x8] sm:$0xff] %vm368, %v367
        %s371 = scalar_lea.vmem [#allocation3], %s278
        %v372 = vld [vmem:[%s371] sm:$0xff]
        %v373 = vld [vmem:[%s371 + $0x8] sm:$0xff]
        %v374 = vld [vmem:[#allocation7] sm:$0xff]
        %v375 = vld [vmem:[#allocation7 + $0x8] sm:$0xff]
        %v377 = vsel %vm284, %v374, 0
        %v380 = vsel %vm284, %v375, 0
        %382 = vmatprep.subr.mxu0 0.0
        %383 = vmatpush1.msra.mxu0 0.0
        %384 = vmatprep.subr.mxu0 0.0
        %385 = vmatpush1.msra.mxu0 0.0
        %386 = vmatprep.subr.mxu0 0.0
        %387 = vmatpush1.msra.mxu0 0.0
        %388 = vmatprep.subr.mxu0 0.0
        %389 = vmatpush1.msra.mxu0 0.0
        %390 = vmatprep.subr.mxu0 0.0
        %391 = vmatpush1.msra.mxu0 0.0
        %392 = vmatprep.subr.mxu0 0.0
        %393 = vmatpush1.msra.mxu0 0.0
        %394 = vmatprep.subr.mxu0 0.0
        %395 = vmatpush1.msra.mxu0 0.0
        %396 = vmatprep.subr.mxu0 0.0
        %397 = vmatpush1.msra.mxu0 0.0
        %398 = vmatprep.subr.mxu0 0.0
        %399 = vmatpush1.msra.mxu0 0.0
        %400 = vmatprep.subr.mxu0 0.0
        %401 = vmatpush1.msra.mxu0 0.0
        %402 = vmatprep.subr.mxu0 0.0
        %403 = vmatpush1.msra.mxu0 0.0
        %404 = vmatprep.subr.mxu0 0.0
        %405 = vmatpush1.msra.mxu0 0.0
        %406 = vmatprep.subr.mxu0 0.0
        %407 = vmatpush1.msra.mxu0 %v277
        %408 = vmatprep.subr.mxu0 0.0
        %409 = vmatpush1.msra.mxu0 %v276
        %410 = vmatprep.subr.mxu0 0.0
        %411 = vmatpush1.msra.mxu0 %v275
        %412 = vmatprep.subr.mxu0 0.0
        %413 = vmatpush1.msra.mxu0 %v274
        %414 = vmatprep.subr.mxu0 0.0
        %415 = vmatpush2.msra.mxu0 0.0
        %416 = vmatprep.subr.mxu0 0.0
        %417 = vmatpush2.msra.mxu0 0.0
        %418 = vmatprep.subr.mxu0 0.0
        %419 = vmatpush2.msra.mxu0 0.0
        %420 = vmatprep.subr.mxu0 0.0
        %421 = vmatpush2.msra.mxu0 0.0
        %422 = vmatprep.subr.mxu0 0.0
        %423 = vmatpush2.msra.mxu0 0.0
        %424 = vmatprep.subr.mxu0 0.0
        %425 = vmatpush2.msra.mxu0 0.0
        %426 = vmatprep.subr.mxu0 0.0
        %427 = vmatpush2.msra.mxu0 0.0
        %428 = vmatprep.subr.mxu0 0.0
        %429 = vmatpush2.msra.mxu0 0.0
        %430 = vmatprep.subr.mxu0 0.0
        %431 = vmatpush2.msra.mxu0 0.0
        %432 = vmatprep.subr.mxu0 0.0
        %433 = vmatpush2.msra.mxu0 0.0
        %434 = vmatprep.subr.mxu0 0.0
        %435 = vmatpush2.msra.mxu0 0.0
        %436 = vmatprep.subr.mxu0 0.0
        %437 = vmatpush2.msra.mxu0 0.0
        %438 = vmatprep.subr.mxu0 0.0
        %439 = vmatpush2.msra.mxu0 0.0
        %440 = vmatprep.subr.mxu0 0.0
        %441 = vmatpush2.msra.mxu0 0.0
        %442 = vmatprep.subr.mxu0 0.0
        %443 = vmatpush2.msra.mxu0 0.0
        %444 = vmatprep.subr.mxu0 0.0
        %445 = vmatpush2.msra.mxu0 0.0
        %446 = vmatprep.mubr.f32.mxu0 0.0
        %447 = vmatmul.mubr.f32.gmra.mxu0 %v377
        %v448 = vpop.f32.mrf.mxu0
        %v449 = vadd.f32 0.0, %v448
        %v450 = vpop.f32.mrf.mxu0
        %451 = vmatprep.mubr.f32.mxu0 0.0
        %452 = vmatmul.mubr.f32.gmra.mxu0 %v380
        %v453 = vpop.f32.mrf.mxu0
        %v454 = vadd.f32 0.0, %v453
        %v455 = vpop.f32.mrf.mxu0
        %456 = vdwg.mxu0
        %v457 = vadd.f32 %v372, %v449
        %v458 = vadd.f32 %v373, %v454
        %459 = vst.msk [vmem:[%s371] sm:$0xff] %vm368, %v457
        %460 = vst.msk [vmem:[%s371 + $0x8] sm:$0xff] %vm368, %v458
        // Predicated region
        $region49: #{tpu_custom_call.1} parent=31 // pred_check
          _
        $region50: #{tpu_custom_call.1} parent=31 // pred_check_branch
          %462 = sbr.rel (%p265) target = $region52
        $region51: #{tpu_custom_call.1} parent=31 // pred_region
          %v463 = vld [vmem:[#allocation2] sm:$0xff]
          %v464 = vld [vmem:[#allocation2 + $0x8] sm:$0xff]
          %v465 = vld [vmem:[#allocation3] sm:$0xff]
          %v466 = vld [vmem:[#allocation3 + $0x8] sm:$0xff]
          %469 = vrot.lane.b32.xlu0 %v465, 64
          %v470 = vpop.permute.xlu0 %469
          %471 = vrot.lane.b32.xlu0 %v466, 64
          %v472 = vpop.permute.xlu0 %471
          %v475 = vsel %vm368, %v463, %v470
          %v476 = vsel %vm368, %v464, %v472
          %v477 = vlaneseq
          %v478 = vshrl.u32 %v477, 7
          %v479 = vadd.s32 %v478, 8
          %v480 = vrot.slane %v475, 1
          %v481 = vrot.slane %v476, 1
          %vm482 = vcmp.lt.s32.totalorder %v478, 7
          %v483 = vsel %vm482, %v480, %v481
          %v484 = vsel %vm482, %v481, %v480
          %v485 = vrot.slane %v475, 7
          %v486 = vrot.slane %v476, 7
          %vm487 = vcmp.lt.s32.totalorder %v478, 1
          %v488 = vsel %vm487, %v485, %v486
          %v489 = vsel %vm487, %v486, %v485
          %v490 = vand.u32 %v478, 1
          %v491 = vand.u32 %v479, 1
          %vm492 = vcmp.eq.s32.totalorder %v490, 0
          %vm493 = vcmp.eq.s32.totalorder %v491, 0
          %v494 = vsel %vm492, 1, 0
          %v495 = vsel %vm493, 1, 0
          %vm496 = vcmp.eq.s32.totalorder %v494, 1
          %vm497 = vcmp.eq.s32.totalorder %v495, 1
          %v498 = vsel %vm496, %v483, %v489
          %v499 = vsel %vm497, %v484, %v488
          %v500 = vand.u32 %v478, 2
          %v501 = vand.u32 %v479, 2
          %vm502 = vcmp.eq.s32.totalorder %v500, 0
          %vm503 = vcmp.eq.s32.totalorder %v501, 0
          %vm504 = vmxor %vm492, %vm502
          %vm505 = vmxor %vm493, %vm503
          %vm506 = vmxor %vm504, 1
          %vm507 = vmxor %vm505, 1
          %v508 = vmax.f32 %v475, %v498
          %v509 = vmax.f32 %v476, %v499
          %v510 = vmin.f32 %v475, %v498
          %v511 = vmin.f32 %v476, %v499
          %v512 = vsel %vm506, 1, 0
          %v513 = vsel %vm507, 1, 0
          %vm514 = vcmp.eq.s32.totalorder %v512, 1
          %vm515 = vcmp.eq.s32.totalorder %v513, 1
          %v516 = vsel %vm514, %v508, %v510
          %v517 = vsel %vm515, %v509, %v511
          %v518 = vrot.slane %v516, 2
          %v519 = vrot.slane %v517, 2
          %vm520 = vcmp.lt.s32.totalorder %v478, 6
          %v521 = vsel %vm520, %v518, %v519
          %v522 = vsel %vm520, %v519, %v518
          %v523 = vrot.slane %v516, 6
          %v524 = vrot.slane %v517, 6
          %vm525 = vcmp.lt.s32.totalorder %v478, 2
          %v526 = vsel %vm525, %v523, %v524
          %v527 = vsel %vm525, %v524, %v523
          %v528 = vsel %vm502, 1, 0
          %v529 = vsel %vm503, 1, 0
          %vm530 = vcmp.eq.s32.totalorder %v528, 1
          %vm531 = vcmp.eq.s32.totalorder %v529, 1
          %v532 = vsel %vm530, %v521, %v527
          %v533 = vsel %vm531, %v522, %v526
          %v534 = vand.u32 %v478, 4
          %v535 = vand.u32 %v479, 4
          %vm536 = vcmp.eq.s32.totalorder %v534, 0
          %vm537 = vcmp.eq.s32.totalorder %v535, 0
          %vm538 = vmxor %vm502, %vm536
          %vm539 = vmxor %vm503, %vm537
          %vm540 = vmxor %vm538, 1
          %vm541 = vmxor %vm539, 1
          %v542 = vmax.f32 %v516, %v532
          %v543 = vmax.f32 %v517, %v533
          %v544 = vmin.f32 %v516, %v532
          %v545 = vmin.f32 %v517, %v533
          %v546 = vsel %vm540, 1, 0
          %v547 = vsel %vm541, 1, 0
          %vm548 = vcmp.eq.s32.totalorder %v546, 1
          %vm549 = vcmp.eq.s32.totalorder %v547, 1
          %v550 = vsel %vm548, %v542, %v544
          %v551 = vsel %vm549, %v543, %v545
          %v552 = vrot.slane %v550, 1
          %v553 = vrot.slane %v551, 1
          %v554 = vsel %vm482, %v552, %v553
          %v555 = vsel %vm482, %v553, %v552
          %v556 = vrot.slane %v550, 7
          %v557 = vrot.slane %v551, 7
          %v558 = vsel %vm487, %v556, %v557
          %v559 = vsel %vm487, %v557, %v556
          %v560 = vsel %vm496, %v554, %v559
          %v561 = vsel %vm497, %v555, %v558
          %vm562 = vmxor %vm492, %vm536
          %vm563 = vmxor %vm493, %vm537
          %vm564 = vmxor %vm562, 1
          %vm565 = vmxor %vm563, 1
          %v566 = vmax.f32 %v550, %v560
          %v567 = vmax.f32 %v551, %v561
          %v568 = vmin.f32 %v550, %v560
          %v569 = vmin.f32 %v551, %v561
          %v570 = vsel %vm564, 1, 0
          %v571 = vsel %vm565, 1, 0
          %vm572 = vcmp.eq.s32.totalorder %v570, 1
          %vm573 = vcmp.eq.s32.totalorder %v571, 1
          %v574 = vsel %vm572, %v566, %v568
          %v575 = vsel %vm573, %v567, %v569
          %v576 = vrot.slane %v574, 4
          %v577 = vrot.slane %v575, 4
          %vm578 = vcmp.lt.s32.totalorder %v478, 4
          %v579 = vsel %vm578, %v576, %v577
          %v580 = vsel %vm578, %v577, %v576
          %v581 = vsel %vm536, 1, 0
          %v582 = vsel %vm537, 1, 0
          %vm583 = vcmp.eq.s32.totalorder %v581, 1
          %vm584 = vcmp.eq.s32.totalorder %v582, 1
          %v585 = vsel %vm583, %v579, %v580
          %v586 = vsel %vm584, %v580, %v579
          %v587 = vand.u32 %v478, 8
          %v588 = vand.u32 %v479, 8
          %vm589 = vcmp.eq.s32.totalorder %v587, 0
          %vm590 = vcmp.eq.s32.totalorder %v588, 0
          %vm591 = vmxor %vm536, %vm589
          %vm592 = vmxor %vm537, %vm590
          %vm593 = vmxor %vm591, 1
          %vm594 = vmxor %vm592, 1
          %v595 = vmax.f32 %v574, %v585
          %v596 = vmax.f32 %v575, %v586
          %v597 = vmin.f32 %v574, %v585
          %v598 = vmin.f32 %v575, %v586
          %v599 = vsel %vm593, 1, 0
          %v600 = vsel %vm594, 1, 0
          %vm601 = vcmp.eq.s32.totalorder %v599, 1
          %vm602 = vcmp.eq.s32.totalorder %v600, 1
          %v603 = vsel %vm601, %v595, %v597
          %v604 = vsel %vm602, %v596, %v598
          %v605 = vrot.slane %v603, 2
          %v606 = vrot.slane %v604, 2
          %v607 = vsel %vm520, %v605, %v606
          %v608 = vsel %vm520, %v606, %v605
          %v609 = vrot.slane %v603, 6
          %v610 = vrot.slane %v604, 6
          %v611 = vsel %vm525, %v609, %v610
          %v612 = vsel %vm525, %v610, %v609
          %v613 = vsel %vm530, %v607, %v612
          %v614 = vsel %vm531, %v608, %v611
          %vm615 = vmxor %vm502, %vm589
          %vm616 = vmxor %vm503, %vm590
          %vm617 = vmxor %vm615, 1
          %vm618 = vmxor %vm616, 1
          %v619 = vmax.f32 %v603, %v613
          %v620 = vmax.f32 %v604, %v614
          %v621 = vmin.f32 %v603, %v613
          %v622 = vmin.f32 %v604, %v614
          %v623 = vsel %vm617, 1, 0
          %v624 = vsel %vm618, 1, 0
          %vm625 = vcmp.eq.s32.totalorder %v623, 1
          %vm626 = vcmp.eq.s32.totalorder %v624, 1
          %v627 = vsel %vm625, %v619, %v621
          %v628 = vsel %vm626, %v620, %v622
          %v629 = vrot.slane %v627, 1
          %v630 = vrot.slane %v628, 1
          %v631 = vsel %vm482, %v629, %v630
          %v632 = vsel %vm482, %v630, %v629
          %v633 = vrot.slane %v627, 7
          %v634 = vrot.slane %v628, 7
          %v635 = vsel %vm487, %v633, %v634
          %v636 = vsel %vm487, %v634, %v633
          %v637 = vsel %vm496, %v631, %v636
          %v638 = vsel %vm497, %v632, %v635
          %vm639 = vmxor %vm492, %vm589
          %vm640 = vmxor %vm493, %vm590
          %vm641 = vmxor %vm639, 1
          %vm642 = vmxor %vm640, 1
          %v643 = vmax.f32 %v627, %v637
          %v644 = vmax.f32 %v628, %v638
          %v645 = vmin.f32 %v627, %v637
          %v646 = vmin.f32 %v628, %v638
          %v647 = vsel %vm641, 1, 0
          %v648 = vsel %vm642, 1, 0
          %vm649 = vcmp.eq.s32.totalorder %v647, 1
          %vm650 = vcmp.eq.s32.totalorder %v648, 1
          %v651 = vsel %vm649, %v643, %v645
          %v652 = vsel %vm650, %v644, %v646
          %v653 = vand.u32 %v478, 16
          %v654 = vand.u32 %v479, 16
          %vm655 = vcmp.eq.s32.totalorder %v653, 0
          %vm656 = vcmp.eq.s32.totalorder %v654, 0
          %vm657 = vmxor %vm589, %vm655
          %vm658 = vmxor %vm590, %vm656
          %vm659 = vmxor %vm657, 1
          %vm660 = vmxor %vm658, 1
          %v661 = vmax.f32 %v651, %v652
          %v662 = vmin.f32 %v651, %v652
          %v663 = vsel %vm659, 1, 0
          %v664 = vsel %vm660, 1, 0
          %vm665 = vcmp.eq.s32.totalorder %v663, 1
          %vm666 = vcmp.eq.s32.totalorder %v664, 1
          %v667 = vsel %vm665, %v661, %v662
          %v668 = vsel %vm666, %v661, %v662
          %v669 = vrot.slane %v667, 4
          %v670 = vrot.slane %v668, 4
          %v671 = vsel %vm578, %v669, %v670
          %v672 = vsel %vm578, %v670, %v669
          %v673 = vsel %vm583, %v671, %v672
          %v674 = vsel %vm584, %v672, %v671
          %vm675 = vmxor %vm536, %vm655
          %vm676 = vmxor %vm537, %vm656
          %vm677 = vmxor %vm675, 1
          %vm678 = vmxor %vm676, 1
          %v679 = vmax.f32 %v667, %v673
          %v680 = vmax.f32 %v668, %v674
          %v681 = vmin.f32 %v667, %v673
          %v682 = vmin.f32 %v668, %v674
          %v683 = vsel %vm677, 1, 0
          %v684 = vsel %vm678, 1, 0
          %vm685 = vcmp.eq.s32.totalorder %v683, 1
          %vm686 = vcmp.eq.s32.totalorder %v684, 1
          %v687 = vsel %vm685, %v679, %v681
          %v688 = vsel %vm686, %v680, %v682
          %v689 = vrot.slane %v687, 2
          %v690 = vrot.slane %v688, 2
          %v691 = vsel %vm520, %v689, %v690
          %v692 = vsel %vm520, %v690, %v689
          %v693 = vrot.slane %v687, 6
          %v694 = vrot.slane %v688, 6
          %v695 = vsel %vm525, %v693, %v694
          %v696 = vsel %vm525, %v694, %v693
          %v697 = vsel %vm530, %v691, %v696
          %v698 = vsel %vm531, %v692, %v695
          %vm699 = vmxor %vm502, %vm655
          %vm700 = vmxor %vm503, %vm656
          %vm701 = vmxor %vm699, 1
          %vm702 = vmxor %vm700, 1
          %v703 = vmax.f32 %v687, %v697
          %v704 = vmax.f32 %v688, %v698
          %v705 = vmin.f32 %v687, %v697
          %v706 = vmin.f32 %v688, %v698
          %v707 = vsel %vm701, 1, 0
          %v708 = vsel %vm702, 1, 0
          %vm709 = vcmp.eq.s32.totalorder %v707, 1
          %vm710 = vcmp.eq.s32.totalorder %v708, 1
          %v711 = vsel %vm709, %v703, %v705
          %v712 = vsel %vm710, %v704, %v706
          %v713 = vrot.slane %v711, 1
          %v714 = vrot.slane %v712, 1
          %v715 = vsel %vm482, %v713, %v714
          %v716 = vsel %vm482, %v714, %v713
          %v717 = vrot.slane %v711, 7
          %v718 = vrot.slane %v712, 7
          %v719 = vsel %vm487, %v717, %v718
          %v720 = vsel %vm487, %v718, %v717
          %v721 = vsel %vm496, %v715, %v720
          %v722 = vsel %vm497, %v716, %v719
          %vm723 = vmxor %vm492, %vm655
          %vm724 = vmxor %vm493, %vm656
          %vm725 = vmxor %vm723, 1
          %vm726 = vmxor %vm724, 1
          %v727 = vmax.f32 %v711, %v721
          %v728 = vmax.f32 %v712, %v722
          %v729 = vmin.f32 %v711, %v721
          %v730 = vmin.f32 %v712, %v722
          %v731 = vsel %vm725, 1, 0
          %v732 = vsel %vm726, 1, 0
          %vm733 = vcmp.eq.s32.totalorder %v731, 1
          %vm734 = vcmp.eq.s32.totalorder %v732, 1
          %v735 = vsel %vm733, %v727, %v729
          %v736 = vsel %vm734, %v728, %v730
          %739 = vrot.lane.b32.xlu0 %v735, 64
          %v740 = vpop.permute.xlu0 %739
          %741 = vrot.lane.b32.xlu0 %v736, 64
          %v742 = vpop.permute.xlu0 %741
          %v745 = vsub.f32 %v735, %v740
          %v746 = vsub.f32 %v736, %v742
          %v747 = vmul.f32 %v745, %v745
          %v748 = vmul.f32 %v746, %v746
          %v749 = vsel %vm368, %v747, 0.0
          %v750 = vsel %vm368, %v748, 0.0
          %v751 = vadd.f32 %v749, %v750
          %v752 = vrot.slane %v751, 4
          %v753 = vadd.f32 %v751, %v752
          %v754 = vrot.slane %v753, 2
          %v755 = vadd.f32 %v753, %v754
          %v756 = vrot.slane %v755, 1
          %v757 = vadd.f32 %v755, %v756
          %v758 = vsel %vm368, %v757, 0.0
          %759 = vst [vmem:[%s259] sm:$0x1] %v758
        $region52: #{tpu_custom_call.1} parent=31 // pred_fallthru
          _
        %s760 = sand.u32 %s130, 1
        %s761 = scalar_lea.sflag [#allocation6], %s760
        %s762 = sand.u32 %s130, 1
        %s763 = scalar_lea.vmem [#allocation10], %s762
        // Predicated region
        $region53: #{tpu_custom_call.1} parent=31 // pred_check
          %p764 = pneg %p140
        $region54: #{tpu_custom_call.1} parent=31 // pred_check_branch
          %766 = sbr.rel (%p764) target = $region56
        $region55: #{tpu_custom_call.1} parent=31 // pred_region
          %s768 = ssub.s32 16, 16
          %769 = vsyncadd %s761, %s768
          %s770 = smul.addr %s24, 16
          %s771 = scalar_lea.hbm %s3, %s770
          %s773 = sshll.u32 %s763, 4
          %s774 = int_to_ptr.vmem [resolvable:$true] %s773
          %776 = dma.vmem_to_hbm [thread:$0]  %s774, 16, %s771, %s761
        $region56: #{tpu_custom_call.1} parent=31 // pred_fallthru
          _
      $region32: #{tpu_custom_call.1} parent=5 // pred_fallthru
        _
      %p777 = scmp.le.s32.totalorder 2, %s14
      // Predicated region
      $region57: #{tpu_custom_call.1} parent=5 // pred_check
        %p778 = pneg %p777
      $region58: #{tpu_custom_call.1} parent=5 // pred_check_branch
        %780 = sbr.rel (%p778) target = $region60
      $region59: #{tpu_custom_call.1} parent=5 // pred_region
        %s781 = ssub.s32 %s14, 2
        // Predicated region
        $region61: #{tpu_custom_call.1} parent=59 // pred_check
          %p782 = pneg %p146
        $region62: #{tpu_custom_call.1} parent=59 // pred_check_branch
          %784 = sbr.rel (%p782) target = $region64
        $region63: #{tpu_custom_call.1} parent=59 // pred_region
          %s785 = sand.u32 %s131, 1
          %s786 = scalar_lea.sflag [#allocation6], %s785
          %s787 = sand.u32 %s131, 1
          %s788 = scalar_lea.vmem [#allocation10], %s787
          %789 = dma.done %s786, 16
        $region64: #{tpu_custom_call.1} parent=59 // pred_fallthru
          _
      $region60: #{tpu_custom_call.1} parent=5 // pred_fallthru
        _
    $region6: #{tpu_custom_call.1} parent=1 // loop_footer
      %s18 = sadd.s32 1, %s14
    $region7: #{tpu_custom_call.1} parent=1 // loop_footer_branch
      %13 = sbr.rel target = $region3
    $region8: #{tpu_custom_call.1} parent=1 // loop_exit
      _
    %790 = vsyncpa [#allocation5], 1
    %s791 = scalar_lea.sflag [#allocation5], 1
    %792 = vsyncpa %s791, 1
    %793 = vsyncpa [#allocation8], 1
    %794 = vsyncpa [#allocation6], 1
    %s795 = scalar_lea.sflag [#allocation6], 1
    %796 = vsyncpa %s795, 1

</llo_original>
